<compile_context>
chip_gen: v6e
topology: v6e:2x2x1
jax: 0.10.0
libtpu: 0.0.40
codegen_flags: <defaults>
</compile_context>

<pallas_src>
import jax
import jax.numpy as jnp
from jax import lax
from jax.experimental import pallas as pl
from jax.experimental.pallas import tpu as pltpu

LANES = 128     # lane-dense output width
SUBLANES = 8    # sublane-dense output height


def textcnn_fused_kernel(ids_ref, emb_ref, wp_ref, bp_ref, wd_ref, bd_ref, out_ref):
    """ids(SMEM) -> embed gather+mean (one-hot matmul) -> pooler -> dense
       -> cosine similarity -> sigmoid, all resident in VMEM."""
    twoB, S = ids_ref.shape            # static (4, 8)
    V, E = emb_ref.shape               # (100, 32)
    H = wd_ref.shape[1]                # 32
    B = twoB // 2

    # ---- Embedding gather + mean pool as a one-hot "count" matmul -----------
    # counts[b, v] = #{s : ids[b, s] == v};  mean = (counts @ emb) / S.
    # 2B*S scalar SMEM reads + VPU compares + one MXU pass; avoids dynamic
    # sublane gathers and keeps the whole front-end inside this kernel.
    lane_v = lax.broadcasted_iota(jnp.int32, (1, V), 1)
    rows = []
    for b in range(twoB):                       # static unroll (tiny trip count)
        cnt = jnp.zeros((1, V), jnp.float32)
        for s in range(S):
            tok = ids_ref[b, s]                 # scalar SMEM read
            cnt = cnt + (lane_v == tok).astype(jnp.float32)
        rows.append(cnt)
    counts = jnp.concatenate(rows, axis=0)      # (2B, V)
    mean = jnp.dot(counts, emb_ref[...], preferred_element_type=jnp.float32)
    mean = mean * jnp.float32(1.0 / S)          # (2B, E)

    # ---- Synthetic BERT pooler + dense head, both sentences stacked ---------
    pooled = jnp.tanh(
        jnp.dot(mean, wp_ref[...], preferred_element_type=jnp.float32) + bp_ref[...]
    )                                                                   # (2B, E)
    h = jnp.dot(pooled, wd_ref[...], preferred_element_type=jnp.float32) + bd_ref[...]  # (2B, H)

    h1 = h[:B, :]                               # (B, H) static slices
    h2 = h[B:, :]                               # (B, H)

    # torch.cosine_similarity semantics (dim=1, eps=1e-8):
    #   cos = <h1,h2> / max(||h1||*||h2||, eps)
    # 1/max(sqrt(ss1*ss2), eps) == rsqrt(max(ss1*ss2, eps^2)) -> EUP rsqrt.
    dot = jnp.sum(h1 * h2, axis=-1, keepdims=True)          # (B, 1)
    ss1 = jnp.sum(h1 * h1, axis=-1, keepdims=True)
    ss2 = jnp.sum(h2 * h2, axis=-1, keepdims=True)
    eps2 = jnp.float32(1e-8) * jnp.float32(1e-8)
    cos = dot * lax.rsqrt(jnp.maximum(ss1 * ss2, eps2))      # (B, 1)

    prob = jax.nn.sigmoid(cos)                               # (B, 1)

    # Sublane- and lane-dense unmasked store: pad rows to 8, broadcast across 128.
    prob_pad = jnp.concatenate(
        [prob, jnp.zeros((SUBLANES - B, 1), jnp.float32)], axis=0)       # (8, 1)
    out_ref[...] = jnp.broadcast_to(prob_pad, out_ref.shape)             # (8, 128)


def textcnn_forward(sent1, sent2, params):
    """Full forward in ONE pallas_call: ids scalar-prefetched, table + weights in VMEM."""
    ids = jnp.concatenate([sent1, sent2], axis=0).astype(jnp.int32)      # (2B, S)
    twoB, S = ids.shape
    B = twoB // 2

    emb = params["emb"]
    V, E = emb.shape
    w_pool = params["w_pool"]
    b_pool = params["b_pool"].reshape(1, E)
    w_dense = params["w_dense"]
    H = w_dense.shape[1]
    b_dense = params["b_dense"].reshape(1, H)

    # Advisory cost hint for XLA scheduling (latency-bound micro-kernel).
    flops = 2 * twoB * (V * E + E * E + E * H)
    transcendentals = twoB * E + 2 * B                      # tanh + rsqrt + sigmoid
    bytes_accessed = 4 * (ids.size + emb.size + w_pool.size + b_pool.size
                          + w_dense.size + b_dense.size + SUBLANES * LANES)

    out = pl.pallas_call(
        textcnn_fused_kernel,
        out_shape=jax.ShapeDtypeStruct((SUBLANES, LANES), jnp.float32),
        grid_spec=pltpu.PrefetchScalarGridSpec(
            num_scalar_prefetch=1,                           # ids -> SMEM
            grid=(1,),
            in_specs=[
                pl.BlockSpec((V, E), lambda i, ids_ref: (0, 0)),
                pl.BlockSpec((E, E), lambda i, ids_ref: (0, 0)),
                pl.BlockSpec((1, E), lambda i, ids_ref: (0, 0)),
                pl.BlockSpec((E, H), lambda i, ids_ref: (0, 0)),
                pl.BlockSpec((1, H), lambda i, ids_ref: (0, 0)),
            ],
            out_specs=pl.BlockSpec((SUBLANES, LANES), lambda i, ids_ref: (0, 0)),
        ),
        compiler_params=pltpu.CompilerParams(
            dimension_semantics=("arbitrary",)),
        cost_estimate=pl.CostEstimate(
            flops=flops,
            transcendentals=transcendentals,
            bytes_accessed=bytes_accessed),
    )(ids, emb, w_pool, b_pool, w_dense, b_dense)

    return out[:B, 0]                                        # (B,)


if __name__ == "__main__":
    # Small, module-consistent shapes.
    vocab_size = 100
    seq_len = 8
    d_embedding = 32
    d_hidden = 32
    batch = 2

    key = jax.random.PRNGKey(0)
    k_emb, k_wp, k_bp, k_wd, k_bd, k_s1, k_s2 = jax.random.split(key, 7)

    params = {
        "emb": jax.random.normal(k_emb, (vocab_size, d_embedding), jnp.float32) * 0.02,
        "w_pool": jax.random.normal(k_wp, (d_embedding, d_embedding), jnp.float32) * 0.1,
        "b_pool": jax.random.normal(k_bp, (d_embedding,), jnp.float32) * 0.01,
        "w_dense": jax.random.normal(k_wd, (d_embedding, d_hidden), jnp.float32) * 0.1,
        "b_dense": jax.random.normal(k_bd, (d_hidden,), jnp.float32) * 0.01,
    }

    sent1 = jax.random.randint(k_s1, (batch, seq_len), 0, vocab_size, jnp.int32)
    sent2 = jax.random.randint(k_s2, (batch, seq_len), 0, vocab_size, jnp.int32)

    out = textcnn_forward(sent1, sent2, params)
    jax.block_until_ready(out)

    # Pure-JAX reference of the whole pipeline (torch cosine_similarity semantics).
    sents = jnp.concatenate([sent1, sent2], axis=0)
    mean = jnp.mean(jnp.take(params["emb"], sents, axis=0), axis=1)
    pooled = jnp.tanh(mean @ params["w_pool"] + params["b_pool"])
    h = pooled @ params["w_dense"] + params["b_dense"]
    h1, h2 = h[:batch], h[batch:]
    n1 = jnp.linalg.norm(h1, axis=-1)
    n2 = jnp.linalg.norm(h2, axis=-1)
    cos = jnp.sum(h1 * h2, axis=-1) / jnp.maximum(n1 * n2, 1e-8)
    ref = jax.nn.sigmoid(cos)

    assert out.shape == (batch,)
    assert jnp.allclose(out, ref, atol=1e-5, rtol=1e-5)
    print("KERNEL_OK")
</pallas_src>

<mosaic_0001>
module attributes {stable_mosaic.version = 11 : i64} {
  func.func @textcnn_fused_kernel(%arg0: i32, %arg1: memref<4x8xi32, #tpu.memory_space<smem>>, %arg2: memref<100x32xf32, #tpu.memory_space<vmem>>, %arg3: memref<32x32xf32, #tpu.memory_space<vmem>>, %arg4: memref<1x32xf32, #tpu.memory_space<vmem>>, %arg5: memref<32x32xf32, #tpu.memory_space<vmem>>, %arg6: memref<1x32xf32, #tpu.memory_space<vmem>>, %arg7: memref<8x128xf32, #tpu.memory_space<vmem>>) attributes {dimension_semantics = [#tpu.dimension_semantics<arbitrary>], iteration_bounds = array<i64: 1>, scalar_prefetch = 1 : i64, scratch_operands = 0 : i64, tpu.core_type = #tpu.core_type<tc>, window_params = [{pipeline_mode = #tpu.pipeline_mode<synchronous>, transform_indices = @transform_0, window_bounds = array<i64: 100, 32>}, {pipeline_mode = #tpu.pipeline_mode<synchronous>, transform_indices = @transform_1, window_bounds = array<i64: 32, 32>}, {pipeline_mode = #tpu.pipeline_mode<synchronous>, transform_indices = @transform_2, window_bounds = array<i64: 1, 32>}, {pipeline_mode = #tpu.pipeline_mode<synchronous>, transform_indices = @transform_3, window_bounds = array<i64: 32, 32>}, {pipeline_mode = #tpu.pipeline_mode<synchronous>, transform_indices = @transform_4, window_bounds = array<i64: 1, 32>}, {pipeline_mode = #tpu.pipeline_mode<synchronous>, transform_indices = @transform_5, window_bounds = array<i64: 8, 128>}]} {
    %0 = tpu.iota {dimensions = array<i32: 1>} : vector<1x100xi32>
    %cst = arith.constant 0.000000e+00 : f32
    %1 = vector.broadcast %cst : f32 to vector<1x100xf32>
    %c0 = arith.constant 0 : index
    %c0_0 = arith.constant 0 : index
    %2 = memref.load %arg1[%c0, %c0_0] : memref<4x8xi32, #tpu.memory_space<smem>>
    %3 = vector.broadcast %2 : i32 to vector<1x100xi32>
    %4 = arith.cmpi eq, %0, %3 : vector<1x100xi32>
    %5 = arith.extui %4 : vector<1x100xi1> to vector<1x100xi32>
    %6 = arith.sitofp %5 : vector<1x100xi32> to vector<1x100xf32>
    %7 = arith.addf %1, %6 : vector<1x100xf32>
    %c0_1 = arith.constant 0 : index
    %c1 = arith.constant 1 : index
    %8 = memref.load %arg1[%c0_1, %c1] : memref<4x8xi32, #tpu.memory_space<smem>>
    %9 = vector.broadcast %8 : i32 to vector<1x100xi32>
    %10 = arith.cmpi eq, %0, %9 : vector<1x100xi32>
    %11 = arith.extui %10 : vector<1x100xi1> to vector<1x100xi32>
    %12 = arith.sitofp %11 : vector<1x100xi32> to vector<1x100xf32>
    %13 = arith.addf %7, %12 : vector<1x100xf32>
    %c0_2 = arith.constant 0 : index
    %c2 = arith.constant 2 : index
    %14 = memref.load %arg1[%c0_2, %c2] : memref<4x8xi32, #tpu.memory_space<smem>>
    %15 = vector.broadcast %14 : i32 to vector<1x100xi32>
    %16 = arith.cmpi eq, %0, %15 : vector<1x100xi32>
    %17 = arith.extui %16 : vector<1x100xi1> to vector<1x100xi32>
    %18 = arith.sitofp %17 : vector<1x100xi32> to vector<1x100xf32>
    %19 = arith.addf %13, %18 : vector<1x100xf32>
    %c0_3 = arith.constant 0 : index
    %c3 = arith.constant 3 : index
    %20 = memref.load %arg1[%c0_3, %c3] : memref<4x8xi32, #tpu.memory_space<smem>>
    %21 = vector.broadcast %20 : i32 to vector<1x100xi32>
    %22 = arith.cmpi eq, %0, %21 : vector<1x100xi32>
    %23 = arith.extui %22 : vector<1x100xi1> to vector<1x100xi32>
    %24 = arith.sitofp %23 : vector<1x100xi32> to vector<1x100xf32>
    %25 = arith.addf %19, %24 : vector<1x100xf32>
    %c0_4 = arith.constant 0 : index
    %c4 = arith.constant 4 : index
    %26 = memref.load %arg1[%c0_4, %c4] : memref<4x8xi32, #tpu.memory_space<smem>>
    %27 = vector.broadcast %26 : i32 to vector<1x100xi32>
    %28 = arith.cmpi eq, %0, %27 : vector<1x100xi32>
    %29 = arith.extui %28 : vector<1x100xi1> to vector<1x100xi32>
    %30 = arith.sitofp %29 : vector<1x100xi32> to vector<1x100xf32>
    %31 = arith.addf %25, %30 : vector<1x100xf32>
    %c0_5 = arith.constant 0 : index
    %c5 = arith.constant 5 : index
    %32 = memref.load %arg1[%c0_5, %c5] : memref<4x8xi32, #tpu.memory_space<smem>>
    %33 = vector.broadcast %32 : i32 to vector<1x100xi32>
    %34 = arith.cmpi eq, %0, %33 : vector<1x100xi32>
    %35 = arith.extui %34 : vector<1x100xi1> to vector<1x100xi32>
    %36 = arith.sitofp %35 : vector<1x100xi32> to vector<1x100xf32>
    %37 = arith.addf %31, %36 : vector<1x100xf32>
    %c0_6 = arith.constant 0 : index
    %c6 = arith.constant 6 : index
    %38 = memref.load %arg1[%c0_6, %c6] : memref<4x8xi32, #tpu.memory_space<smem>>
    %39 = vector.broadcast %38 : i32 to vector<1x100xi32>
    %40 = arith.cmpi eq, %0, %39 : vector<1x100xi32>
    %41 = arith.extui %40 : vector<1x100xi1> to vector<1x100xi32>
    %42 = arith.sitofp %41 : vector<1x100xi32> to vector<1x100xf32>
    %43 = arith.addf %37, %42 : vector<1x100xf32>
    %c0_7 = arith.constant 0 : index
    %c7 = arith.constant 7 : index
    %44 = memref.load %arg1[%c0_7, %c7] : memref<4x8xi32, #tpu.memory_space<smem>>
    %45 = vector.broadcast %44 : i32 to vector<1x100xi32>
    %46 = arith.cmpi eq, %0, %45 : vector<1x100xi32>
    %47 = arith.extui %46 : vector<1x100xi1> to vector<1x100xi32>
    %48 = arith.sitofp %47 : vector<1x100xi32> to vector<1x100xf32>
    %49 = arith.addf %43, %48 : vector<1x100xf32>
    %cst_8 = arith.constant 0.000000e+00 : f32
    %50 = vector.broadcast %cst_8 : f32 to vector<1x100xf32>
    %c1_9 = arith.constant 1 : index
    %c0_10 = arith.constant 0 : index
    %51 = memref.load %arg1[%c1_9, %c0_10] : memref<4x8xi32, #tpu.memory_space<smem>>
    %52 = vector.broadcast %51 : i32 to vector<1x100xi32>
    %53 = arith.cmpi eq, %0, %52 : vector<1x100xi32>
    %54 = arith.extui %53 : vector<1x100xi1> to vector<1x100xi32>
    %55 = arith.sitofp %54 : vector<1x100xi32> to vector<1x100xf32>
    %56 = arith.addf %50, %55 : vector<1x100xf32>
    %c1_11 = arith.constant 1 : index
    %c1_12 = arith.constant 1 : index
    %57 = memref.load %arg1[%c1_11, %c1_12] : memref<4x8xi32, #tpu.memory_space<smem>>
    %58 = vector.broadcast %57 : i32 to vector<1x100xi32>
    %59 = arith.cmpi eq, %0, %58 : vector<1x100xi32>
    %60 = arith.extui %59 : vector<1x100xi1> to vector<1x100xi32>
    %61 = arith.sitofp %60 : vector<1x100xi32> to vector<1x100xf32>
    %62 = arith.addf %56, %61 : vector<1x100xf32>
    %c1_13 = arith.constant 1 : index
    %c2_14 = arith.constant 2 : index
    %63 = memref.load %arg1[%c1_13, %c2_14] : memref<4x8xi32, #tpu.memory_space<smem>>
    %64 = vector.broadcast %63 : i32 to vector<1x100xi32>
    %65 = arith.cmpi eq, %0, %64 : vector<1x100xi32>
    %66 = arith.extui %65 : vector<1x100xi1> to vector<1x100xi32>
    %67 = arith.sitofp %66 : vector<1x100xi32> to vector<1x100xf32>
    %68 = arith.addf %62, %67 : vector<1x100xf32>
    %c1_15 = arith.constant 1 : index
    %c3_16 = arith.constant 3 : index
    %69 = memref.load %arg1[%c1_15, %c3_16] : memref<4x8xi32, #tpu.memory_space<smem>>
    %70 = vector.broadcast %69 : i32 to vector<1x100xi32>
    %71 = arith.cmpi eq, %0, %70 : vector<1x100xi32>
    %72 = arith.extui %71 : vector<1x100xi1> to vector<1x100xi32>
    %73 = arith.sitofp %72 : vector<1x100xi32> to vector<1x100xf32>
    %74 = arith.addf %68, %73 : vector<1x100xf32>
    %c1_17 = arith.constant 1 : index
    %c4_18 = arith.constant 4 : index
    %75 = memref.load %arg1[%c1_17, %c4_18] : memref<4x8xi32, #tpu.memory_space<smem>>
    %76 = vector.broadcast %75 : i32 to vector<1x100xi32>
    %77 = arith.cmpi eq, %0, %76 : vector<1x100xi32>
    %78 = arith.extui %77 : vector<1x100xi1> to vector<1x100xi32>
    %79 = arith.sitofp %78 : vector<1x100xi32> to vector<1x100xf32>
    %80 = arith.addf %74, %79 : vector<1x100xf32>
    %c1_19 = arith.constant 1 : index
    %c5_20 = arith.constant 5 : index
    %81 = memref.load %arg1[%c1_19, %c5_20] : memref<4x8xi32, #tpu.memory_space<smem>>
    %82 = vector.broadcast %81 : i32 to vector<1x100xi32>
    %83 = arith.cmpi eq, %0, %82 : vector<1x100xi32>
    %84 = arith.extui %83 : vector<1x100xi1> to vector<1x100xi32>
    %85 = arith.sitofp %84 : vector<1x100xi32> to vector<1x100xf32>
    %86 = arith.addf %80, %85 : vector<1x100xf32>
    %c1_21 = arith.constant 1 : index
    %c6_22 = arith.constant 6 : index
    %87 = memref.load %arg1[%c1_21, %c6_22] : memref<4x8xi32, #tpu.memory_space<smem>>
    %88 = vector.broadcast %87 : i32 to vector<1x100xi32>
    %89 = arith.cmpi eq, %0, %88 : vector<1x100xi32>
    %90 = arith.extui %89 : vector<1x100xi1> to vector<1x100xi32>
    %91 = arith.sitofp %90 : vector<1x100xi32> to vector<1x100xf32>
    %92 = arith.addf %86, %91 : vector<1x100xf32>
    %c1_23 = arith.constant 1 : index
    %c7_24 = arith.constant 7 : index
    %93 = memref.load %arg1[%c1_23, %c7_24] : memref<4x8xi32, #tpu.memory_space<smem>>
    %94 = vector.broadcast %93 : i32 to vector<1x100xi32>
    %95 = arith.cmpi eq, %0, %94 : vector<1x100xi32>
    %96 = arith.extui %95 : vector<1x100xi1> to vector<1x100xi32>
    %97 = arith.sitofp %96 : vector<1x100xi32> to vector<1x100xf32>
    %98 = arith.addf %92, %97 : vector<1x100xf32>
    %cst_25 = arith.constant 0.000000e+00 : f32
    %99 = vector.broadcast %cst_25 : f32 to vector<1x100xf32>
    %c2_26 = arith.constant 2 : index
    %c0_27 = arith.constant 0 : index
    %100 = memref.load %arg1[%c2_26, %c0_27] : memref<4x8xi32, #tpu.memory_space<smem>>
    %101 = vector.broadcast %100 : i32 to vector<1x100xi32>
    %102 = arith.cmpi eq, %0, %101 : vector<1x100xi32>
    %103 = arith.extui %102 : vector<1x100xi1> to vector<1x100xi32>
    %104 = arith.sitofp %103 : vector<1x100xi32> to vector<1x100xf32>
    %105 = arith.addf %99, %104 : vector<1x100xf32>
    %c2_28 = arith.constant 2 : index
    %c1_29 = arith.constant 1 : index
    %106 = memref.load %arg1[%c2_28, %c1_29] : memref<4x8xi32, #tpu.memory_space<smem>>
    %107 = vector.broadcast %106 : i32 to vector<1x100xi32>
    %108 = arith.cmpi eq, %0, %107 : vector<1x100xi32>
    %109 = arith.extui %108 : vector<1x100xi1> to vector<1x100xi32>
    %110 = arith.sitofp %109 : vector<1x100xi32> to vector<1x100xf32>
    %111 = arith.addf %105, %110 : vector<1x100xf32>
    %c2_30 = arith.constant 2 : index
    %c2_31 = arith.constant 2 : index
    %112 = memref.load %arg1[%c2_30, %c2_31] : memref<4x8xi32, #tpu.memory_space<smem>>
    %113 = vector.broadcast %112 : i32 to vector<1x100xi32>
    %114 = arith.cmpi eq, %0, %113 : vector<1x100xi32>
    %115 = arith.extui %114 : vector<1x100xi1> to vector<1x100xi32>
    %116 = arith.sitofp %115 : vector<1x100xi32> to vector<1x100xf32>
    %117 = arith.addf %111, %116 : vector<1x100xf32>
    %c2_32 = arith.constant 2 : index
    %c3_33 = arith.constant 3 : index
    %118 = memref.load %arg1[%c2_32, %c3_33] : memref<4x8xi32, #tpu.memory_space<smem>>
    %119 = vector.broadcast %118 : i32 to vector<1x100xi32>
    %120 = arith.cmpi eq, %0, %119 : vector<1x100xi32>
    %121 = arith.extui %120 : vector<1x100xi1> to vector<1x100xi32>
    %122 = arith.sitofp %121 : vector<1x100xi32> to vector<1x100xf32>
    %123 = arith.addf %117, %122 : vector<1x100xf32>
    %c2_34 = arith.constant 2 : index
    %c4_35 = arith.constant 4 : index
    %124 = memref.load %arg1[%c2_34, %c4_35] : memref<4x8xi32, #tpu.memory_space<smem>>
    %125 = vector.broadcast %124 : i32 to vector<1x100xi32>
    %126 = arith.cmpi eq, %0, %125 : vector<1x100xi32>
    %127 = arith.extui %126 : vector<1x100xi1> to vector<1x100xi32>
    %128 = arith.sitofp %127 : vector<1x100xi32> to vector<1x100xf32>
    %129 = arith.addf %123, %128 : vector<1x100xf32>
    %c2_36 = arith.constant 2 : index
    %c5_37 = arith.constant 5 : index
    %130 = memref.load %arg1[%c2_36, %c5_37] : memref<4x8xi32, #tpu.memory_space<smem>>
    %131 = vector.broadcast %130 : i32 to vector<1x100xi32>
    %132 = arith.cmpi eq, %0, %131 : vector<1x100xi32>
    %133 = arith.extui %132 : vector<1x100xi1> to vector<1x100xi32>
    %134 = arith.sitofp %133 : vector<1x100xi32> to vector<1x100xf32>
    %135 = arith.addf %129, %134 : vector<1x100xf32>
    %c2_38 = arith.constant 2 : index
    %c6_39 = arith.constant 6 : index
    %136 = memref.load %arg1[%c2_38, %c6_39] : memref<4x8xi32, #tpu.memory_space<smem>>
    %137 = vector.broadcast %136 : i32 to vector<1x100xi32>
    %138 = arith.cmpi eq, %0, %137 : vector<1x100xi32>
    %139 = arith.extui %138 : vector<1x100xi1> to vector<1x100xi32>
    %140 = arith.sitofp %139 : vector<1x100xi32> to vector<1x100xf32>
    %141 = arith.addf %135, %140 : vector<1x100xf32>
    %c2_40 = arith.constant 2 : index
    %c7_41 = arith.constant 7 : index
    %142 = memref.load %arg1[%c2_40, %c7_41] : memref<4x8xi32, #tpu.memory_space<smem>>
    %143 = vector.broadcast %142 : i32 to vector<1x100xi32>
    %144 = arith.cmpi eq, %0, %143 : vector<1x100xi32>
    %145 = arith.extui %144 : vector<1x100xi1> to vector<1x100xi32>
    %146 = arith.sitofp %145 : vector<1x100xi32> to vector<1x100xf32>
    %147 = arith.addf %141, %146 : vector<1x100xf32>
    %cst_42 = arith.constant 0.000000e+00 : f32
    %148 = vector.broadcast %cst_42 : f32 to vector<1x100xf32>
    %c3_43 = arith.constant 3 : index
    %c0_44 = arith.constant 0 : index
    %149 = memref.load %arg1[%c3_43, %c0_44] : memref<4x8xi32, #tpu.memory_space<smem>>
    %150 = vector.broadcast %149 : i32 to vector<1x100xi32>
    %151 = arith.cmpi eq, %0, %150 : vector<1x100xi32>
    %152 = arith.extui %151 : vector<1x100xi1> to vector<1x100xi32>
    %153 = arith.sitofp %152 : vector<1x100xi32> to vector<1x100xf32>
    %154 = arith.addf %148, %153 : vector<1x100xf32>
    %c3_45 = arith.constant 3 : index
    %c1_46 = arith.constant 1 : index
    %155 = memref.load %arg1[%c3_45, %c1_46] : memref<4x8xi32, #tpu.memory_space<smem>>
    %156 = vector.broadcast %155 : i32 to vector<1x100xi32>
    %157 = arith.cmpi eq, %0, %156 : vector<1x100xi32>
    %158 = arith.extui %157 : vector<1x100xi1> to vector<1x100xi32>
    %159 = arith.sitofp %158 : vector<1x100xi32> to vector<1x100xf32>
    %160 = arith.addf %154, %159 : vector<1x100xf32>
    %c3_47 = arith.constant 3 : index
    %c2_48 = arith.constant 2 : index
    %161 = memref.load %arg1[%c3_47, %c2_48] : memref<4x8xi32, #tpu.memory_space<smem>>
    %162 = vector.broadcast %161 : i32 to vector<1x100xi32>
    %163 = arith.cmpi eq, %0, %162 : vector<1x100xi32>
    %164 = arith.extui %163 : vector<1x100xi1> to vector<1x100xi32>
    %165 = arith.sitofp %164 : vector<1x100xi32> to vector<1x100xf32>
    %166 = arith.addf %160, %165 : vector<1x100xf32>
    %c3_49 = arith.constant 3 : index
    %c3_50 = arith.constant 3 : index
    %167 = memref.load %arg1[%c3_49, %c3_50] : memref<4x8xi32, #tpu.memory_space<smem>>
    %168 = vector.broadcast %167 : i32 to vector<1x100xi32>
    %169 = arith.cmpi eq, %0, %168 : vector<1x100xi32>
    %170 = arith.extui %169 : vector<1x100xi1> to vector<1x100xi32>
    %171 = arith.sitofp %170 : vector<1x100xi32> to vector<1x100xf32>
    %172 = arith.addf %166, %171 : vector<1x100xf32>
    %c3_51 = arith.constant 3 : index
    %c4_52 = arith.constant 4 : index
    %173 = memref.load %arg1[%c3_51, %c4_52] : memref<4x8xi32, #tpu.memory_space<smem>>
    %174 = vector.broadcast %173 : i32 to vector<1x100xi32>
    %175 = arith.cmpi eq, %0, %174 : vector<1x100xi32>
    %176 = arith.extui %175 : vector<1x100xi1> to vector<1x100xi32>
    %177 = arith.sitofp %176 : vector<1x100xi32> to vector<1x100xf32>
    %178 = arith.addf %172, %177 : vector<1x100xf32>
    %c3_53 = arith.constant 3 : index
    %c5_54 = arith.constant 5 : index
    %179 = memref.load %arg1[%c3_53, %c5_54] : memref<4x8xi32, #tpu.memory_space<smem>>
    %180 = vector.broadcast %179 : i32 to vector<1x100xi32>
    %181 = arith.cmpi eq, %0, %180 : vector<1x100xi32>
    %182 = arith.extui %181 : vector<1x100xi1> to vector<1x100xi32>
    %183 = arith.sitofp %182 : vector<1x100xi32> to vector<1x100xf32>
    %184 = arith.addf %178, %183 : vector<1x100xf32>
    %c3_55 = arith.constant 3 : index
    %c6_56 = arith.constant 6 : index
    %185 = memref.load %arg1[%c3_55, %c6_56] : memref<4x8xi32, #tpu.memory_space<smem>>
    %186 = vector.broadcast %185 : i32 to vector<1x100xi32>
    %187 = arith.cmpi eq, %0, %186 : vector<1x100xi32>
    %188 = arith.extui %187 : vector<1x100xi1> to vector<1x100xi32>
    %189 = arith.sitofp %188 : vector<1x100xi32> to vector<1x100xf32>
    %190 = arith.addf %184, %189 : vector<1x100xf32>
    %c3_57 = arith.constant 3 : index
    %c7_58 = arith.constant 7 : index
    %191 = memref.load %arg1[%c3_57, %c7_58] : memref<4x8xi32, #tpu.memory_space<smem>>
    %192 = vector.broadcast %191 : i32 to vector<1x100xi32>
    %193 = arith.cmpi eq, %0, %192 : vector<1x100xi32>
    %194 = arith.extui %193 : vector<1x100xi1> to vector<1x100xi32>
    %195 = arith.sitofp %194 : vector<1x100xi32> to vector<1x100xf32>
    %196 = arith.addf %190, %195 : vector<1x100xf32>
    %197 = tpu.concatenate %49, %98, %147, %196 in 0 : vector<1x100xf32>, vector<1x100xf32>, vector<1x100xf32>, vector<1x100xf32> -> vector<4x100xf32>
    %c0_59 = arith.constant 0 : index
    %c0_60 = arith.constant 0 : index
    %198 = vector.load %arg2[%c0_59, %c0_60] : memref<100x32xf32, #tpu.memory_space<vmem>>, vector<100x32xf32>
    %cst_61 = arith.constant dense<0.000000e+00> : vector<4x32xf32>
    %199 = tpu.matmul %197, %198, %cst_61 {dimension_numbers = #tpu.dot_dimension_numbers<[1], [0], [0], [1], [0, 0, 1, 1], [], []>} : vector<4x100xf32>, vector<100x32xf32>, vector<4x32xf32> -> vector<4x32xf32>
    %cst_62 = arith.constant 1.250000e-01 : f32
    %200 = vector.broadcast %cst_62 : f32 to vector<4x32xf32>
    %201 = arith.mulf %199, %200 : vector<4x32xf32>
    %c0_63 = arith.constant 0 : index
    %c0_64 = arith.constant 0 : index
    %202 = vector.load %arg3[%c0_63, %c0_64] : memref<32x32xf32, #tpu.memory_space<vmem>>, vector<32x32xf32>
    %cst_65 = arith.constant dense<0.000000e+00> : vector<4x32xf32>
    %203 = tpu.matmul %201, %202, %cst_65 {dimension_numbers = #tpu.dot_dimension_numbers<[1], [0], [0], [1], [0, 0, 1, 1], [], []>} : vector<4x32xf32>, vector<32x32xf32>, vector<4x32xf32> -> vector<4x32xf32>
    %c0_66 = arith.constant 0 : index
    %c0_67 = arith.constant 0 : index
    %204 = vector.load %arg4[%c0_66, %c0_67] : memref<1x32xf32, #tpu.memory_space<vmem>>, vector<1x32xf32>
    %205 = vector.broadcast %204 : vector<1x32xf32> to vector<4x32xf32>
    %206 = arith.addf %203, %205 : vector<4x32xf32>
    %207 = math.tanh %206 : vector<4x32xf32>
    %c0_68 = arith.constant 0 : index
    %c0_69 = arith.constant 0 : index
    %208 = vector.load %arg5[%c0_68, %c0_69] : memref<32x32xf32, #tpu.memory_space<vmem>>, vector<32x32xf32>
    %cst_70 = arith.constant dense<0.000000e+00> : vector<4x32xf32>
    %209 = tpu.matmul %207, %208, %cst_70 {dimension_numbers = #tpu.dot_dimension_numbers<[1], [0], [0], [1], [0, 0, 1, 1], [], []>} : vector<4x32xf32>, vector<32x32xf32>, vector<4x32xf32> -> vector<4x32xf32>
    %c0_71 = arith.constant 0 : index
    %c0_72 = arith.constant 0 : index
    %210 = vector.load %arg6[%c0_71, %c0_72] : memref<1x32xf32, #tpu.memory_space<vmem>>, vector<1x32xf32>
    %211 = vector.broadcast %210 : vector<1x32xf32> to vector<4x32xf32>
    %212 = arith.addf %209, %211 : vector<4x32xf32>
    %213 = vector.extract_strided_slice %212 {offsets = [0, 0], sizes = [2, 32], strides = [1, 1]} : vector<4x32xf32> to vector<2x32xf32>
    %214 = vector.extract_strided_slice %212 {offsets = [2, 0], sizes = [2, 32], strides = [1, 1]} : vector<4x32xf32> to vector<2x32xf32>
    %215 = arith.mulf %213, %214 : vector<2x32xf32>
    %cst_73 = arith.constant dense<0.000000e+00> : vector<2xf32>
    %216 = vector.multi_reduction <add>, %215, %cst_73 [1] : vector<2x32xf32> to vector<2xf32>
    %217 = vector.shape_cast %216 : vector<2xf32> to vector<2x1xf32>
    %218 = arith.mulf %213, %213 : vector<2x32xf32>
    %cst_74 = arith.constant dense<0.000000e+00> : vector<2xf32>
    %219 = vector.multi_reduction <add>, %218, %cst_74 [1] : vector<2x32xf32> to vector<2xf32>
    %220 = vector.shape_cast %219 : vector<2xf32> to vector<2x1xf32>
    %221 = arith.mulf %214, %214 : vector<2x32xf32>
    %cst_75 = arith.constant dense<0.000000e+00> : vector<2xf32>
    %222 = vector.multi_reduction <add>, %221, %cst_75 [1] : vector<2x32xf32> to vector<2xf32>
    %223 = vector.shape_cast %222 : vector<2xf32> to vector<2x1xf32>
    %cst_76 = arith.constant 9.99999993E-9 : f32
    %cst_77 = arith.constant 9.99999993E-9 : f32
    %224 = arith.mulf %cst_76, %cst_77 : f32
    %225 = arith.mulf %220, %223 : vector<2x1xf32>
    %226 = vector.broadcast %224 : f32 to vector<2x1xf32>
    %227 = arith.maximumf %225, %226 : vector<2x1xf32>
    %228 = math.rsqrt %227 : vector<2x1xf32>
    %229 = arith.mulf %217, %228 : vector<2x1xf32>
    %230 = arith.negf %229 : vector<2x1xf32>
    %231 = math.exp %230 : vector<2x1xf32>
    %cst_78 = arith.constant 1.000000e+00 : f32
    %232 = vector.broadcast %cst_78 : f32 to vector<2x1xf32>
    %233 = arith.addf %232, %231 : vector<2x1xf32>
    %234 = arith.divf %232, %233 : vector<2x1xf32>
    %cst_79 = arith.constant 0.000000e+00 : f32
    %235 = vector.broadcast %cst_79 : f32 to vector<6x1xf32>
    %236 = tpu.concatenate %234, %235 in 0 : vector<2x1xf32>, vector<6x1xf32> -> vector<8x1xf32>
    %237 = vector.shape_cast %236 : vector<8x1xf32> to vector<8x1xf32>
    %238 = vector.broadcast %237 : vector<8x1xf32> to vector<8x128xf32>
    %c0_80 = arith.constant 0 : index
    %c0_81 = arith.constant 0 : index
    %239 = vector.load %arg7[%c0_80, %c0_81] : memref<8x128xf32, #tpu.memory_space<vmem>>, vector<8x128xf32>
    tpu.vector_store %arg7[%c0_80, %c0_81], %238 {strides = array<i32>} : memref<8x128xf32, #tpu.memory_space<vmem>>, vector<8x128xf32>,
    return
  }
  func.func @transform_0(%arg0: i32, %arg1: memref<4x8xi32, #tpu.memory_space<smem>>) -> (i32, i32) {
    %c0_i32 = arith.constant 0 : i32
    %c0_i32_0 = arith.constant 0 : i32
    %c0_i32_1 = arith.constant 0 : i32
    return %c0_i32, %c0_i32_0 : i32, i32
  }
  func.func @transform_1(%arg0: i32, %arg1: memref<4x8xi32, #tpu.memory_space<smem>>) -> (i32, i32) {
    %c0_i32 = arith.constant 0 : i32
    %c0_i32_0 = arith.constant 0 : i32
    %c0_i32_1 = arith.constant 0 : i32
    return %c0_i32, %c0_i32_0 : i32, i32
  }
  func.func @transform_2(%arg0: i32, %arg1: memref<4x8xi32, #tpu.memory_space<smem>>) -> (i32, i32) {
    %c0_i32 = arith.constant 0 : i32
    %c0_i32_0 = arith.constant 0 : i32
    %c0_i32_1 = arith.constant 0 : i32
    return %c0_i32, %c0_i32_0 : i32, i32
  }
  func.func @transform_3(%arg0: i32, %arg1: memref<4x8xi32, #tpu.memory_space<smem>>) -> (i32, i32) {
    %c0_i32 = arith.constant 0 : i32
    %c0_i32_0 = arith.constant 0 : i32
    %c0_i32_1 = arith.constant 0 : i32
    return %c0_i32, %c0_i32_0 : i32, i32
  }
  func.func @transform_4(%arg0: i32, %arg1: memref<4x8xi32, #tpu.memory_space<smem>>) -> (i32, i32) {
    %c0_i32 = arith.constant 0 : i32
    %c0_i32_0 = arith.constant 0 : i32
    %c0_i32_1 = arith.constant 0 : i32
    return %c0_i32, %c0_i32_0 : i32, i32
  }
  func.func @transform_5(%arg0: i32, %arg1: memref<4x8xi32, #tpu.memory_space<smem>>) -> (i32, i32) {
    %c0_i32 = arith.constant 0 : i32
    %c0_i32_0 = arith.constant 0 : i32
    %c0_i32_1 = arith.constant 0 : i32
    return %c0_i32, %c0_i32_0 : i32, i32
  }
}

</mosaic_0001>

<llo_original>
// kernel: tpu_custom_call.1
$region0: #{tpu_custom_call.1}
  #allocation0 [shape = 'u32[]', space=smem, size = 0x4, offset = 0x4, fixed_abs, tag = 'smem constant byte address 0x4 - core index']
  #allocation1 [shape = 'u32[144,128]{1,0:T(1,128)}', space=vmem, size = 0x12000, scoped, tag = 'internal scratch']
  #allocation2 [shape = 's32[1]{0}', space=sflag, size = 0x4, scoped, tag = 'scoped memory for tpu_custom_call.1']
  #allocation3 [shape = 'u8[2048]{0}', space=smem, size = 0x800, scoped, tag = 'prefetched SMEM operand 0']
  %s0 = inlined_call_operand.vmem [shape: s32[4,8], index: 0, kind: input, shape index: {}]
  %s1 = inlined_call_operand.vmem [shape: f32[100,32], index: 1, kind: input, shape index: {}]
  %s2 = inlined_call_operand.vmem [shape: f32[32,32], index: 2, kind: input, shape index: {}]
  %s3 = inlined_call_operand.vmem [shape: f32[1,32], index: 3, kind: input, shape index: {}]
  %s4 = inlined_call_operand.vmem [shape: f32[32,32], index: 4, kind: input, shape index: {}]
  %s5 = inlined_call_operand.vmem [shape: f32[1,32], index: 5, kind: input, shape index: {}]
  %s6 = inlined_call_operand.hbm [shape: f32[8,128], index: 6, kind: output, shape index: {}]
  %s7 = sld [smem:[#allocation0]]
  $region30: #{tpu_custom_call.1} parent=0
    _
  %s9 = ssub.s32 1, %s7
  %s10 = scalar_select 0, %s9, %s7
  %s11 = sshll.u32 %s0, 4
  %s12 = int_to_ptr.vmem [resolvable:$true] %s11
  %14 = dma.vmem_to_smem %s12, 64, [#allocation3], [#allocation2]
  %15 = dma.done [#allocation2], 64
  %16 = sfence
  $region1: #{tpu_custom_call.1} parent=0
    #allocation4 [shape = 'u8[4096]{0}', space=vmem, size = 0x1000, scoped, tag = 'output window, operand 0, single buffered']
    #allocation5 [shape = 's32[1]{0}', space=sflag, size = 0x4, scoped, tag = 'scoped memory for tpu_custom_call.1']
    %17 = vsyncpa [#allocation5], 0
    // Predicated region
    $region2: #{tpu_custom_call.1} parent=1 // pred_check
      _
    $region3: #{tpu_custom_call.1} parent=1 // pred_check_branch
      %19 = sbr.rel (0) target = $region5
    $region4: #{tpu_custom_call.1} parent=1 // pred_region
      _
    $region5: #{tpu_custom_call.1} parent=1 // pred_fallthru
      _
    // Predicated region
    $region6: #{tpu_custom_call.1} parent=1 // pred_check
      _
    $region7: #{tpu_custom_call.1} parent=1 // pred_check_branch
      %21 = sbr.rel (0) target = $region9
    $region8: #{tpu_custom_call.1} parent=1 // pred_region
      _
    $region9: #{tpu_custom_call.1} parent=1 // pred_fallthru
      _
    // Predicated region
    $region10: #{tpu_custom_call.1} parent=1 // pred_check
      _
    $region11: #{tpu_custom_call.1} parent=1 // pred_check_branch
      %23 = sbr.rel (0) target = $region13
    $region12: #{tpu_custom_call.1} parent=1 // pred_region
      _
    $region13: #{tpu_custom_call.1} parent=1 // pred_fallthru
      _
    // Predicated region
    $region14: #{tpu_custom_call.1} parent=1 // pred_check
      _
    $region15: #{tpu_custom_call.1} parent=1 // pred_check_branch
      %25 = sbr.rel (0) target = $region17
    $region16: #{tpu_custom_call.1} parent=1 // pred_region
      _
    $region17: #{tpu_custom_call.1} parent=1 // pred_fallthru
      _
    // Predicated region
    $region18: #{tpu_custom_call.1} parent=1 // pred_check
      _
    $region19: #{tpu_custom_call.1} parent=1 // pred_check_branch
      %27 = sbr.rel (0) target = $region21
    $region20: #{tpu_custom_call.1} parent=1 // pred_region
      _
    $region21: #{tpu_custom_call.1} parent=1 // pred_fallthru
      _
    %v28 = vlaneseq
    %v29 = vand.u32 %v28, 127
    %s30 = sld [smem:[#allocation3]]
    %v31 = vstv %s30
    %vm32 = vcmp.eq.s32.totalorder %v29, %v31
    %v33 = vsel %vm32, 1, 0
    %v34 = vcvt.s32.f32 %v33
    %v35 = vadd.f32 %v34, 0.0
    %s36 = sld [smem:[#allocation3 + $0x1]]
    %v37 = vstv %s36
    %vm38 = vcmp.eq.s32.totalorder %v29, %v37
    %v39 = vsel %vm38, 1, 0
    %v40 = vcvt.s32.f32 %v39
    %v41 = vadd.f32 %v35, %v40
    %s42 = sld [smem:[#allocation3 + $0x2]]
    %v43 = vstv %s42
    %vm44 = vcmp.eq.s32.totalorder %v29, %v43
    %v45 = vsel %vm44, 1, 0
    %v46 = vcvt.s32.f32 %v45
    %v47 = vadd.f32 %v41, %v46
    %s48 = sld [smem:[#allocation3 + $0x3]]
    %v49 = vstv %s48
    %vm50 = vcmp.eq.s32.totalorder %v29, %v49
    %v51 = vsel %vm50, 1, 0
    %v52 = vcvt.s32.f32 %v51
    %v53 = vadd.f32 %v47, %v52
    %s54 = sld [smem:[#allocation3 + $0x4]]
    %v55 = vstv %s54
    %vm56 = vcmp.eq.s32.totalorder %v29, %v55
    %v57 = vsel %vm56, 1, 0
    %v58 = vcvt.s32.f32 %v57
    %v59 = vadd.f32 %v53, %v58
    %s60 = sld [smem:[#allocation3 + $0x5]]
    %v61 = vstv %s60
    %vm62 = vcmp.eq.s32.totalorder %v29, %v61
    %v63 = vsel %vm62, 1, 0
    %v64 = vcvt.s32.f32 %v63
    %v65 = vadd.f32 %v59, %v64
    %s66 = sld [smem:[#allocation3 + $0x6]]
    %v67 = vstv %s66
    %vm68 = vcmp.eq.s32.totalorder %v29, %v67
    %v69 = vsel %vm68, 1, 0
    %v70 = vcvt.s32.f32 %v69
    %v71 = vadd.f32 %v65, %v70
    %s72 = sld [smem:[#allocation3 + $0x7]]
    %v73 = vstv %s72
    %vm74 = vcmp.eq.s32.totalorder %v29, %v73
    %v75 = vsel %vm74, 1, 0
    %v76 = vcvt.s32.f32 %v75
    %v77 = vadd.f32 %v71, %v76
    %s78 = sld [smem:[#allocation3 + $0x80]]
    %v79 = vstv %s78
    %vm80 = vcmp.eq.s32.totalorder %v29, %v79
    %v81 = vsel %vm80, 1, 0
    %v82 = vcvt.s32.f32 %v81
    %v83 = vadd.f32 %v82, 0.0
    %s84 = sld [smem:[#allocation3 + $0x81]]
    %v85 = vstv %s84
    %vm86 = vcmp.eq.s32.totalorder %v29, %v85
    %v87 = vsel %vm86, 1, 0
    %v88 = vcvt.s32.f32 %v87
    %v89 = vadd.f32 %v83, %v88
    %s90 = sld [smem:[#allocation3 + $0x82]]
    %v91 = vstv %s90
    %vm92 = vcmp.eq.s32.totalorder %v29, %v91
    %v93 = vsel %vm92, 1, 0
    %v94 = vcvt.s32.f32 %v93
    %v95 = vadd.f32 %v89, %v94
    %s96 = sld [smem:[#allocation3 + $0x83]]
    %v97 = vstv %s96
    %vm98 = vcmp.eq.s32.totalorder %v29, %v97
    %v99 = vsel %vm98, 1, 0
    %v100 = vcvt.s32.f32 %v99
    %v101 = vadd.f32 %v95, %v100
    %s102 = sld [smem:[#allocation3 + $0x84]]
    %v103 = vstv %s102
    %vm104 = vcmp.eq.s32.totalorder %v29, %v103
    %v105 = vsel %vm104, 1, 0
    %v106 = vcvt.s32.f32 %v105
    %v107 = vadd.f32 %v101, %v106
    %s108 = sld [smem:[#allocation3 + $0x85]]
    %v109 = vstv %s108
    %vm110 = vcmp.eq.s32.totalorder %v29, %v109
    %v111 = vsel %vm110, 1, 0
    %v112 = vcvt.s32.f32 %v111
    %v113 = vadd.f32 %v107, %v112
    %s114 = sld [smem:[#allocation3 + $0x86]]
    %v115 = vstv %s114
    %vm116 = vcmp.eq.s32.totalorder %v29, %v115
    %v117 = vsel %vm116, 1, 0
    %v118 = vcvt.s32.f32 %v117
    %v119 = vadd.f32 %v113, %v118
    %s120 = sld [smem:[#allocation3 + $0x87]]
    %v121 = vstv %s120
    %vm122 = vcmp.eq.s32.totalorder %v29, %v121
    %v123 = vsel %vm122, 1, 0
    %v124 = vcvt.s32.f32 %v123
    %v125 = vadd.f32 %v119, %v124
    %s126 = sld [smem:[#allocation3 + $0x100]]
    %v127 = vstv %s126
    %vm128 = vcmp.eq.s32.totalorder %v29, %v127
    %v129 = vsel %vm128, 1, 0
    %v130 = vcvt.s32.f32 %v129
    %v131 = vadd.f32 %v130, 0.0
    %s132 = sld [smem:[#allocation3 + $0x101]]
    %v133 = vstv %s132
    %vm134 = vcmp.eq.s32.totalorder %v29, %v133
    %v135 = vsel %vm134, 1, 0
    %v136 = vcvt.s32.f32 %v135
    %v137 = vadd.f32 %v131, %v136
    %s138 = sld [smem:[#allocation3 + $0x102]]
    %v139 = vstv %s138
    %vm140 = vcmp.eq.s32.totalorder %v29, %v139
    %v141 = vsel %vm140, 1, 0
    %v142 = vcvt.s32.f32 %v141
    %v143 = vadd.f32 %v137, %v142
    %s144 = sld [smem:[#allocation3 + $0x103]]
    %v145 = vstv %s144
    %vm146 = vcmp.eq.s32.totalorder %v29, %v145
    %v147 = vsel %vm146, 1, 0
    %v148 = vcvt.s32.f32 %v147
    %v149 = vadd.f32 %v143, %v148
    %s150 = sld [smem:[#allocation3 + $0x104]]
    %v151 = vstv %s150
    %vm152 = vcmp.eq.s32.totalorder %v29, %v151
    %v153 = vsel %vm152, 1, 0
    %v154 = vcvt.s32.f32 %v153
    %v155 = vadd.f32 %v149, %v154
    %s156 = sld [smem:[#allocation3 + $0x105]]
    %v157 = vstv %s156
    %vm158 = vcmp.eq.s32.totalorder %v29, %v157
    %v159 = vsel %vm158, 1, 0
    %v160 = vcvt.s32.f32 %v159
    %v161 = vadd.f32 %v155, %v160
    %s162 = sld [smem:[#allocation3 + $0x106]]
    %v163 = vstv %s162
    %vm164 = vcmp.eq.s32.totalorder %v29, %v163
    %v165 = vsel %vm164, 1, 0
    %v166 = vcvt.s32.f32 %v165
    %v167 = vadd.f32 %v161, %v166
    %s168 = sld [smem:[#allocation3 + $0x107]]
    %v169 = vstv %s168
    %vm170 = vcmp.eq.s32.totalorder %v29, %v169
    %v171 = vsel %vm170, 1, 0
    %v172 = vcvt.s32.f32 %v171
    %v173 = vadd.f32 %v167, %v172
    %s174 = sld [smem:[#allocation3 + $0x180]]
    %v175 = vstv %s174
    %vm176 = vcmp.eq.s32.totalorder %v29, %v175
    %v177 = vsel %vm176, 1, 0
    %v178 = vcvt.s32.f32 %v177
    %v179 = vadd.f32 %v178, 0.0
    %s180 = sld [smem:[#allocation3 + $0x181]]
    %v181 = vstv %s180
    %vm182 = vcmp.eq.s32.totalorder %v29, %v181
    %v183 = vsel %vm182, 1, 0
    %v184 = vcvt.s32.f32 %v183
    %v185 = vadd.f32 %v179, %v184
    %s186 = sld [smem:[#allocation3 + $0x182]]
    %v187 = vstv %s186
    %vm188 = vcmp.eq.s32.totalorder %v29, %v187
    %v189 = vsel %vm188, 1, 0
    %v190 = vcvt.s32.f32 %v189
    %v191 = vadd.f32 %v185, %v190
    %s192 = sld [smem:[#allocation3 + $0x183]]
    %v193 = vstv %s192
    %vm194 = vcmp.eq.s32.totalorder %v29, %v193
    %v195 = vsel %vm194, 1, 0
    %v196 = vcvt.s32.f32 %v195
    %v197 = vadd.f32 %v191, %v196
    %s198 = sld [smem:[#allocation3 + $0x184]]
    %v199 = vstv %s198
    %vm200 = vcmp.eq.s32.totalorder %v29, %v199
    %v201 = vsel %vm200, 1, 0
    %v202 = vcvt.s32.f32 %v201
    %v203 = vadd.f32 %v197, %v202
    %s204 = sld [smem:[#allocation3 + $0x185]]
    %v205 = vstv %s204
    %vm206 = vcmp.eq.s32.totalorder %v29, %v205
    %v207 = vsel %vm206, 1, 0
    %v208 = vcvt.s32.f32 %v207
    %v209 = vadd.f32 %v203, %v208
    %s210 = sld [smem:[#allocation3 + $0x186]]
    %v211 = vstv %s210
    %vm212 = vcmp.eq.s32.totalorder %v29, %v211
    %v213 = vsel %vm212, 1, 0
    %v214 = vcvt.s32.f32 %v213
    %v215 = vadd.f32 %v209, %v214
    %s216 = sld [smem:[#allocation3 + $0x187]]
    %v217 = vstv %s216
    %vm218 = vcmp.eq.s32.totalorder %v29, %v217
    %v219 = vsel %vm218, 1, 0
    %v220 = vcvt.s32.f32 %v219
    %v221 = vadd.f32 %v215, %v220
    %vm222 = vcmask 1040384
    %v223 = vsel %vm222, %v77, %v125
    %vm224 = vcmask 1041408
    %v225 = vsel %vm224, %v223, %v173
    %vm226 = vcmask 1042432
    %v227 = vsel %vm226, %v225, %v221
    %v228 = vld [vmem:[%s1] sm:$0xff]
    %v229 = vld [vmem:[%s1 + $0x8] sm:$0xff]
    %v230 = vld [vmem:[%s1 + $0x10] sm:$0xff]
    %v231 = vld [vmem:[%s1 + $0x18] sm:$0xff]
    %v232 = vld [vmem:[%s1 + $0x20] sm:$0xff]
    %v233 = vld [vmem:[%s1 + $0x28] sm:$0xff]
    %v234 = vld [vmem:[%s1 + $0x30] sm:$0xff]
    %v235 = vld [vmem:[%s1 + $0x38] sm:$0xff]
    %v236 = vld [vmem:[%s1 + $0x40] sm:$0xff]
    %v237 = vld [vmem:[%s1 + $0x48] sm:$0xff]
    %v238 = vld [vmem:[%s1 + $0x50] sm:$0xff]
    %v239 = vld [vmem:[%s1 + $0x58] sm:$0xff]
    %v240 = vld [vmem:[%s1 + $0x60] sm:$0xf]
    %vm241 = vcmask 818176
    %v243 = vsel %vm241, %v227, 0
    %vm245 = vcmask 1043456
    %v247 = vsel %vm245, %v240, 0
    %249 = vmatprep.subr.mxu0 0.0
    %250 = vmatpush1.msra.mxu0 0.0
    %251 = vmatprep.subr.mxu0 0.0
    %252 = vmatpush1.msra.mxu0 0.0
    %253 = vmatprep.subr.mxu0 0.0
    %254 = vmatpush1.msra.mxu0 0.0
    %255 = vmatprep.subr.mxu0 0.0
    %256 = vmatpush1.msra.mxu0 %v247
    %257 = vmatprep.subr.mxu0 0.0
    %258 = vmatpush1.msra.mxu0 %v239
    %259 = vmatprep.subr.mxu0 0.0
    %260 = vmatpush1.msra.mxu0 %v238
    %261 = vmatprep.subr.mxu0 0.0
    %262 = vmatpush1.msra.mxu0 %v237
    %263 = vmatprep.subr.mxu0 0.0
    %264 = vmatpush1.msra.mxu0 %v236
    %265 = vmatprep.subr.mxu0 0.0
    %266 = vmatpush1.msra.mxu0 %v235
    %267 = vmatprep.subr.mxu0 0.0
    %268 = vmatpush1.msra.mxu0 %v234
    %269 = vmatprep.subr.mxu0 0.0
    %270 = vmatpush1.msra.mxu0 %v233
    %271 = vmatprep.subr.mxu0 0.0
    %272 = vmatpush1.msra.mxu0 %v232
    %273 = vmatprep.subr.mxu0 0.0
    %274 = vmatpush1.msra.mxu0 %v231
    %275 = vmatprep.subr.mxu0 0.0
    %276 = vmatpush1.msra.mxu0 %v230
    %277 = vmatprep.subr.mxu0 0.0
    %278 = vmatpush1.msra.mxu0 %v229
    %279 = vmatprep.subr.mxu0 0.0
    %280 = vmatpush1.msra.mxu0 %v228
    %281 = vmatprep.subr.mxu0 0.0
    %282 = vmatpush2.msra.mxu0 0.0
    %283 = vmatprep.subr.mxu0 0.0
    %284 = vmatpush2.msra.mxu0 0.0
    %285 = vmatprep.subr.mxu0 0.0
    %286 = vmatpush2.msra.mxu0 0.0
    %287 = vmatprep.subr.mxu0 0.0
    %288 = vmatpush2.msra.mxu0 0.0
    %289 = vmatprep.subr.mxu0 0.0
    %290 = vmatpush2.msra.mxu0 0.0
    %291 = vmatprep.subr.mxu0 0.0
    %292 = vmatpush2.msra.mxu0 0.0
    %293 = vmatprep.subr.mxu0 0.0
    %294 = vmatpush2.msra.mxu0 0.0
    %295 = vmatprep.subr.mxu0 0.0
    %296 = vmatpush2.msra.mxu0 0.0
    %297 = vmatprep.subr.mxu0 0.0
    %298 = vmatpush2.msra.mxu0 0.0
    %299 = vmatprep.subr.mxu0 0.0
    %300 = vmatpush2.msra.mxu0 0.0
    %301 = vmatprep.subr.mxu0 0.0
    %302 = vmatpush2.msra.mxu0 0.0
    %303 = vmatprep.subr.mxu0 0.0
    %304 = vmatpush2.msra.mxu0 0.0
    %305 = vmatprep.subr.mxu0 0.0
    %306 = vmatpush2.msra.mxu0 0.0
    %307 = vmatprep.subr.mxu0 0.0
    %308 = vmatpush2.msra.mxu0 0.0
    %309 = vmatprep.subr.mxu0 0.0
    %310 = vmatpush2.msra.mxu0 0.0
    %311 = vmatprep.subr.mxu0 0.0
    %312 = vmatpush2.msra.mxu0 0.0
    %313 = vmatprep.mubr.f32.mxu0 0.0
    %314 = vmatmul.mubr.f32.gmra.mxu0 %v243
    %v315 = vpop.f32.mrf.mxu0
    %v316 = vadd.f32 0.0, %v315
    %v317 = vpop.f32.mrf.mxu0
    %318 = vdwg.mxu0
    %v319 = vmul.f32 %v316, 0.125
    %v320 = vld [vmem:[%s2] sm:$0xff]
    %v321 = vld [vmem:[%s2 + $0x8] sm:$0xff]
    %v322 = vld [vmem:[%s2 + $0x10] sm:$0xff]
    %v323 = vld [vmem:[%s2 + $0x18] sm:$0xff]
    %v324 = vld [vmem:[%s3] sm:$0x1]
    %v326 = vlaneseq
    %v327 = vshrl.u32 %v326, 7
    %v328 = vsub.s32 0, %v327
    %v329 = vrot.slane %v324, %v328
    %vm331 = vcmask 261120
    %v333 = vsel %vm331, %v319, 0
    %335 = vmatprep.subr.mxu0 0.0
    %336 = vmatpush1.msra.mxu0 0.0
    %337 = vmatprep.subr.mxu0 0.0
    %338 = vmatpush1.msra.mxu0 0.0
    %339 = vmatprep.subr.mxu0 0.0
    %340 = vmatpush1.msra.mxu0 0.0
    %341 = vmatprep.subr.mxu0 0.0
    %342 = vmatpush1.msra.mxu0 0.0
    %343 = vmatprep.subr.mxu0 0.0
    %344 = vmatpush1.msra.mxu0 0.0
    %345 = vmatprep.subr.mxu0 0.0
    %346 = vmatpush1.msra.mxu0 0.0
    %347 = vmatprep.subr.mxu0 0.0
    %348 = vmatpush1.msra.mxu0 0.0
    %349 = vmatprep.subr.mxu0 0.0
    %350 = vmatpush1.msra.mxu0 0.0
    %351 = vmatprep.subr.mxu0 0.0
    %352 = vmatpush1.msra.mxu0 0.0
    %353 = vmatprep.subr.mxu0 0.0
    %354 = vmatpush1.msra.mxu0 0.0
    %355 = vmatprep.subr.mxu0 0.0
    %356 = vmatpush1.msra.mxu0 0.0
    %357 = vmatprep.subr.mxu0 0.0
    %358 = vmatpush1.msra.mxu0 0.0
    %359 = vmatprep.subr.mxu0 0.0
    %360 = vmatpush1.msra.mxu0 %v323
    %361 = vmatprep.subr.mxu0 0.0
    %362 = vmatpush1.msra.mxu0 %v322
    %363 = vmatprep.subr.mxu0 0.0
    %364 = vmatpush1.msra.mxu0 %v321
    %365 = vmatprep.subr.mxu0 0.0
    %366 = vmatpush1.msra.mxu0 %v320
    %367 = vmatprep.subr.mxu0 0.0
    %368 = vmatpush2.msra.mxu0 0.0
    %369 = vmatprep.subr.mxu0 0.0
    %370 = vmatpush2.msra.mxu0 0.0
    %371 = vmatprep.subr.mxu0 0.0
    %372 = vmatpush2.msra.mxu0 0.0
    %373 = vmatprep.subr.mxu0 0.0
    %374 = vmatpush2.msra.mxu0 0.0
    %375 = vmatprep.subr.mxu0 0.0
    %376 = vmatpush2.msra.mxu0 0.0
    %377 = vmatprep.subr.mxu0 0.0
    %378 = vmatpush2.msra.mxu0 0.0
    %379 = vmatprep.subr.mxu0 0.0
    %380 = vmatpush2.msra.mxu0 0.0
    %381 = vmatprep.subr.mxu0 0.0
    %382 = vmatpush2.msra.mxu0 0.0
    %383 = vmatprep.subr.mxu0 0.0
    %384 = vmatpush2.msra.mxu0 0.0
    %385 = vmatprep.subr.mxu0 0.0
    %386 = vmatpush2.msra.mxu0 0.0
    %387 = vmatprep.subr.mxu0 0.0
    %388 = vmatpush2.msra.mxu0 0.0
    %389 = vmatprep.subr.mxu0 0.0
    %390 = vmatpush2.msra.mxu0 0.0
    %391 = vmatprep.subr.mxu0 0.0
    %392 = vmatpush2.msra.mxu0 0.0
    %393 = vmatprep.subr.mxu0 0.0
    %394 = vmatpush2.msra.mxu0 0.0
    %395 = vmatprep.subr.mxu0 0.0
    %396 = vmatpush2.msra.mxu0 0.0
    %397 = vmatprep.subr.mxu0 0.0
    %398 = vmatpush2.msra.mxu0 0.0
    %399 = vmatprep.mubr.f32.mxu0 0.0
    %400 = vmatmul.mubr.f32.gmra.mxu0 %v333
    %v401 = vpop.f32.mrf.mxu0
    %v402 = vadd.f32 %v329, %v401
    %v403 = vpop.f32.mrf.mxu0
    %404 = vdwg.mxu0
    %v405 = vtanh.pop %v402
    %v406 = vld [vmem:[%s4] sm:$0xff]
    %v407 = vld [vmem:[%s4 + $0x8] sm:$0xff]
    %v408 = vld [vmem:[%s4 + $0x10] sm:$0xff]
    %v409 = vld [vmem:[%s4 + $0x18] sm:$0xff]
    %v410 = vld [vmem:[%s5] sm:$0x1]
    %v412 = vlaneseq
    %v413 = vshrl.u32 %v412, 7
    %v414 = vsub.s32 0, %v413
    %v415 = vrot.slane %v410, %v414
    %v418 = vsel %vm331, %v405, 0
    %420 = vmatprep.subr.mxu0 0.0
    %421 = vmatpush1.msra.mxu0 0.0
    %422 = vmatprep.subr.mxu0 0.0
    %423 = vmatpush1.msra.mxu0 0.0
    %424 = vmatprep.subr.mxu0 0.0
    %425 = vmatpush1.msra.mxu0 0.0
    %426 = vmatprep.subr.mxu0 0.0
    %427 = vmatpush1.msra.mxu0 0.0
    %428 = vmatprep.subr.mxu0 0.0
    %429 = vmatpush1.msra.mxu0 0.0
    %430 = vmatprep.subr.mxu0 0.0
    %431 = vmatpush1.msra.mxu0 0.0
    %432 = vmatprep.subr.mxu0 0.0
    %433 = vmatpush1.msra.mxu0 0.0
    %434 = vmatprep.subr.mxu0 0.0
    %435 = vmatpush1.msra.mxu0 0.0
    %436 = vmatprep.subr.mxu0 0.0
    %437 = vmatpush1.msra.mxu0 0.0
    %438 = vmatprep.subr.mxu0 0.0
    %439 = vmatpush1.msra.mxu0 0.0
    %440 = vmatprep.subr.mxu0 0.0
    %441 = vmatpush1.msra.mxu0 0.0
    %442 = vmatprep.subr.mxu0 0.0
    %443 = vmatpush1.msra.mxu0 0.0
    %444 = vmatprep.subr.mxu0 0.0
    %445 = vmatpush1.msra.mxu0 %v409
    %446 = vmatprep.subr.mxu0 0.0
    %447 = vmatpush1.msra.mxu0 %v408
    %448 = vmatprep.subr.mxu0 0.0
    %449 = vmatpush1.msra.mxu0 %v407
    %450 = vmatprep.subr.mxu0 0.0
    %451 = vmatpush1.msra.mxu0 %v406
    %452 = vmatprep.subr.mxu0 0.0
    %453 = vmatpush2.msra.mxu0 0.0
    %454 = vmatprep.subr.mxu0 0.0
    %455 = vmatpush2.msra.mxu0 0.0
    %456 = vmatprep.subr.mxu0 0.0
    %457 = vmatpush2.msra.mxu0 0.0
    %458 = vmatprep.subr.mxu0 0.0
    %459 = vmatpush2.msra.mxu0 0.0
    %460 = vmatprep.subr.mxu0 0.0
    %461 = vmatpush2.msra.mxu0 0.0
    %462 = vmatprep.subr.mxu0 0.0
    %463 = vmatpush2.msra.mxu0 0.0
    %464 = vmatprep.subr.mxu0 0.0
    %465 = vmatpush2.msra.mxu0 0.0
    %466 = vmatprep.subr.mxu0 0.0
    %467 = vmatpush2.msra.mxu0 0.0
    %468 = vmatprep.subr.mxu0 0.0
    %469 = vmatpush2.msra.mxu0 0.0
    %470 = vmatprep.subr.mxu0 0.0
    %471 = vmatpush2.msra.mxu0 0.0
    %472 = vmatprep.subr.mxu0 0.0
    %473 = vmatpush2.msra.mxu0 0.0
    %474 = vmatprep.subr.mxu0 0.0
    %475 = vmatpush2.msra.mxu0 0.0
    %476 = vmatprep.subr.mxu0 0.0
    %477 = vmatpush2.msra.mxu0 0.0
    %478 = vmatprep.subr.mxu0 0.0
    %479 = vmatpush2.msra.mxu0 0.0
    %480 = vmatprep.subr.mxu0 0.0
    %481 = vmatpush2.msra.mxu0 0.0
    %482 = vmatprep.subr.mxu0 0.0
    %483 = vmatpush2.msra.mxu0 0.0
    %484 = vmatprep.mubr.f32.mxu0 0.0
    %485 = vmatmul.mubr.f32.gmra.mxu0 %v418
    %v486 = vpop.f32.mrf.mxu0
    %v487 = vadd.f32 %v415, %v486
    %v488 = vpop.f32.mrf.mxu0
    %489 = vdwg.mxu0
    %v491 = vrot.slane %v487, 2
    %v493 = vmul.f32 %v487, %v491
    %vm494 = vcmask 254976
    %v495 = vsel %vm494, %v493, 0.0
    %496 = vadd.xlane.f32.xlu0 %v495
    %v497 = vpop.xlane.xlu0 %496
    %v498 = vmul.f32 %v487, %v487
    %v499 = vsel %vm494, %v498, 0.0
    %500 = vadd.xlane.f32.xlu0 %v499
    %v501 = vpop.xlane.xlu0 %500
    %vm502 = vcmask 257026
    %v503 = vsel %vm502, %v498, 0.0
    %504 = vadd.xlane.f32.xlu0 %v503
    %v505 = vpop.xlane.xlu0 %504
    %v507 = vrot.slane %v505, 2
    %v509 = vmul.f32 %v501, %v507
    %v510 = vmax.f32 %v509, 1e-16
    %v511 = vrsqrt.pop %v510
    %v512 = vmul.f32 %v497, %v511
    %v513 = vxor.u32 %v512, 2147483648
    %v514 = vmul.f32 %v513, 1.442695
    %v515 = vpow.pop %v514
    %v516 = vadd.f32 %v515, 1.0
    %v517 = vrcp.pop %v516
    %v518 = vmul.f32 1.0, %v517
    %v519 = vsel %vm224, %v518, 0.0
    %521 = vset.pattern.permute.xlu0 0
    %522 = vperm.xlu0 %521, %v519
    %v523 = vpop.permute.xlu0 %522
    %525 = vst [vmem:[#allocation4] sm:$0xff] %v523
    // Predicated region
    $region22: #{tpu_custom_call.1} parent=1 // pred_check
      _
    $region23: #{tpu_custom_call.1} parent=1 // pred_check_branch
      %527 = sbr.rel (0) target = $region25
    $region24: #{tpu_custom_call.1} parent=1 // pred_region
      %s529 = ssub.s32 128, 128
      %530 = vsyncadd [#allocation5], %s529
      %s532 = sshll.u32 [#allocation4], 4
      %s533 = int_to_ptr.vmem [resolvable:$true] %s532
      %535 = dma.vmem_to_hbm [thread:$0]  %s533, 128, %s6, [#allocation5]
    $region25: #{tpu_custom_call.1} parent=1 // pred_fallthru
      _
    // Predicated region
    $region26: #{tpu_custom_call.1} parent=1 // pred_check
      _
    $region27: #{tpu_custom_call.1} parent=1 // pred_check_branch
      %537 = sbr.rel (0) target = $region29
    $region28: #{tpu_custom_call.1} parent=1 // pred_region
      %538 = dma.done [#allocation5], 128
    $region29: #{tpu_custom_call.1} parent=1 // pred_fallthru
      _
    %539 = vsyncpa [#allocation5], 1

</llo_original>
